<compile_context>
chip_gen: v7x
topology: tpu7x:2x2x1
jax: 0.10.0
libtpu: 0.0.40
codegen_flags: <defaults>
</compile_context>

<pallas_src>
import numpy as np
import jax
import jax.numpy as jnp
from jax import lax
from jax.experimental import pallas as pl
from jax.experimental.pallas import tpu as pltpu


# ----------------------------------------------------------------------------
# Bilinear interpolation matrix (torch F.interpolate, align_corners=False).
# ----------------------------------------------------------------------------
def bilinear_resize_matrix(n_in, n_out):
    i = np.arange(n_out, dtype=np.float64)
    src = (i + 0.5) * (n_in / n_out) - 0.5
    src = np.maximum(src, 0.0)
    i0 = np.minimum(np.floor(src).astype(np.int64), n_in - 1)
    i1 = np.minimum(i0 + 1, n_in - 1)
    frac = src - i0
    A = np.zeros((n_out, n_in), dtype=np.float32)
    A[np.arange(n_out), i0] += (1.0 - frac).astype(np.float32)
    A[np.arange(n_out), i1] += frac.astype(np.float32)
    return A


def _chunks(total, size):
    out, s = [], 0
    while s < total:
        c = min(size, total - s)
        out.append((s, c))
        s += c
    return out


# ----------------------------------------------------------------------------
# Kernel 1: separable upsample, HEIGHT stage (per batch image).
#   xh_ext = A_h_ext @ x2d,  A_h_ext has 2 zero rows on top/bottom so the
#   row halo needed by the convs is already zero.
# ----------------------------------------------------------------------------
def _make_height_kernel(rows_out, row_chunk):
    def kernel(ah_ref, x_ref, o_ref):
        xv = x_ref[...]                                     # (H, W*Cin) bf16
        for g0, gr in _chunks(rows_out, row_chunk):
            o_ref[g0:g0 + gr, :] = jnp.dot(
                ah_ref[g0:g0 + gr, :], xv,
                preferred_element_type=jnp.float32).astype(o_ref.dtype)
    return kernel


# ----------------------------------------------------------------------------
# Kernel 2: fused width-upsample + conv3x3(Cin->Cmid)+ReLU + conv3x3(Cmid->Coutp)
# for a block of R output rows (grid = (batch, Hup//R)).
# ----------------------------------------------------------------------------
def _make_fused_kernel(R, WUP, CIN, CMID, COUTP, NRB):
    RB = max(1, 256 // WUP)      # rows per tap matmul  (M = RB*WUP ~= 256)
    CH = 128                     # output-channel chunk (lane native)
    CK = 256                     # contraction chunk

    def kernel(awp_ref, xh_ref, w1_ref, b1_ref, w2_ref, b2_ref, o_ref,
               up_ref, mid_ref):
        rb = pl.program_id(1)
        r0 = rb * R

        # ---- separable upsample, WIDTH stage ------------------------------
        # up_ref row k <-> upsampled row (r0 - 2 + k).  Zero rows of xh_ext and
        # zero rows of A_w_pad give conv1 its zero padding for free.
        awp = awp_ref[...]                                  # (WUP+2, W) bf16
        for k in range(R + 4):
            up_ref[k] = jnp.dot(
                awp, xh_ref[r0 + k],
                preferred_element_type=jnp.float32).astype(up_ref.dtype)

        # ---- conv1 (3x3, CIN->CMID) + bias + ReLU  ->  mid_ref (bf16) -----
        # mid_ref row i <-> conv1 output row (r0 - 1 + i); interior width lives
        # in columns 1..WUP, columns 0 and WUP+1 are the zero pad for conv2.
        zc = jnp.zeros((R + 2, 1, CMID), mid_ref.dtype)
        mid_ref[:, 0:1, :] = zc
        mid_ref[:, WUP + 1:WUP + 2, :] = zc

        for m0, mr in _chunks(R + 2, RB):
            for c0, cw in _chunks(CMID, CH):
                acc = jnp.zeros((mr * WUP, cw), jnp.float32)
                for dy in range(3):
                    for dx in range(3):
                        for k0, kw in _chunks(CIN, CK):
                            lhs = up_ref[m0 + dy:m0 + dy + mr,
                                         dx:dx + WUP, k0:k0 + kw]
                            acc += jnp.dot(
                                lhs.reshape(mr * WUP, kw),
                                w1_ref[dy * 3 + dx, k0:k0 + kw, c0:c0 + cw],
                                preferred_element_type=jnp.float32)
                acc = jnp.maximum(acc + b1_ref[0:1, c0:c0 + cw], 0.0)
                mid_ref[m0:m0 + mr, 1:WUP + 1, c0:c0 + cw] = (
                    acc.reshape(mr, WUP, cw).astype(mid_ref.dtype))

        # conv2 zero-pads its input: mid rows outside [0, Hup) must be zero
        # (not conv1 evaluated on padded input).
        @pl.when(rb == 0)
        def _():
            mid_ref[0:1, :, :] = jnp.zeros((1, WUP + 2, CMID), mid_ref.dtype)

        @pl.when(rb == NRB - 1)
        def _():
            mid_ref[R + 1:R + 2, :, :] = jnp.zeros((1, WUP + 2, CMID),
                                                   mid_ref.dtype)

        # ---- conv2 (3x3, CMID->COUTP) + bias  ->  o_ref (f32) -------------
        for o0, orr in _chunks(R, RB):
            for c0, cw in _chunks(COUTP, CH):
                acc = jnp.zeros((orr * WUP, cw), jnp.float32)
                for dy in range(3):
                    for dx in range(3):
                        for k0, kw in _chunks(CMID, CK):
                            lhs = mid_ref[o0 + dy:o0 + dy + orr,
                                          dx:dx + WUP, k0:k0 + kw]
                            acc += jnp.dot(
                                lhs.reshape(orr * WUP, kw),
                                w2_ref[dy * 3 + dx, k0:k0 + kw, c0:c0 + cw],
                                preferred_element_type=jnp.float32)
                acc = acc + b2_ref[0:1, c0:c0 + cw]
                o_ref[o0:o0 + orr, :, c0:c0 + cw] = (
                    acc.reshape(orr, WUP, cw).astype(o_ref.dtype))

    return kernel


# ----------------------------------------------------------------------------
# ConvHead.forward
# ----------------------------------------------------------------------------
def conv_head_forward(x_nchw, w1, b1, w2, b2, scale=4):
    n, cin, h, w = x_nchw.shape
    cmid = w1.shape[0]
    cout = w2.shape[0]
    hup, wup = scale * h, scale * w
    assert wup % 8 == 0, "upsampled width must be a sublane multiple"
    coutp = -(-cout // 128) * 128                           # lane-dense output

    x_nhwc = jnp.transpose(x_nchw, (0, 2, 3, 1)).astype(jnp.bfloat16)

    # Interpolation operators (bf16 operands; 4x bilinear weights are exact in
    # bf16).  A_h gets 2 zero rows top/bottom, A_w one zero row left/right, so
    # the conv zero padding comes out of the matmuls instead of jnp.pad.
    ah = bilinear_resize_matrix(h, hup)
    aw = bilinear_resize_matrix(w, wup)
    ah_ext = np.zeros((hup + 4, h), np.float32)
    ah_ext[2:hup + 2] = ah
    aw_pad = np.zeros((wup + 2, w), np.float32)
    aw_pad[1:wup + 1] = aw
    ah_ext = jnp.asarray(ah_ext, jnp.bfloat16)
    aw_pad = jnp.asarray(aw_pad, jnp.bfloat16)

    # ---------------- kernel 1: height upsample (separable stage 1) --------
    x2d = x_nhwc.reshape(n, h, w * cin)
    xh2d = pl.pallas_call(
        _make_height_kernel(hup + 4, 32),
        out_shape=jax.ShapeDtypeStruct((n, hup + 4, w * cin), jnp.bfloat16),
        grid=(n,),
        in_specs=[pl.BlockSpec((hup + 4, h), lambda b: (0, 0)),
                  pl.BlockSpec((None, h, w * cin), lambda b: (b, 0, 0))],
        out_specs=pl.BlockSpec((None, hup + 4, w * cin), lambda b: (b, 0, 0)),
        compiler_params=pltpu.CompilerParams(
            dimension_semantics=("parallel",)),
    )(ah_ext, x2d)
    xh = xh2d.reshape(n, hup + 4, w, cin)                   # free HBM reshape

    # ---------------- weights: torch OIHW -> taps (9, Cin, Cout), bf16 -----
    w1t = jnp.transpose(w1, (2, 3, 1, 0)).reshape(9, cin, cmid).astype(jnp.bfloat16)
    w2t = jnp.transpose(w2, (2, 3, 1, 0)).reshape(9, cmid, cout)
    w2t = jnp.pad(w2t, ((0, 0), (0, 0), (0, coutp - cout))).astype(jnp.bfloat16)
    b1r = b1.reshape(1, cmid).astype(jnp.float32)
    b2r = jnp.pad(b2, (0, coutp - cout)).reshape(1, coutp).astype(jnp.float32)

    # ---------------- kernel 2: fused width-upsample + conv1 + ReLU + conv2
    R = 16 if hup % 16 == 0 else hup
    nrb = hup // R
    kernel = _make_fused_kernel(R, wup, cin, cmid, coutp, nrb)

    flops = 2 * n * hup * wup * 9 * (cin * cmid + cmid * coutp)
    bytes_accessed = (xh.size * 2 + w1t.size * 2 + w2t.size * 2
                      + n * hup * wup * coutp * 4)

    y = pl.pallas_call(
        kernel,
        out_shape=jax.ShapeDtypeStruct((n, hup, wup, coutp), jnp.float32),
        grid=(n, nrb),
        in_specs=[
            pl.BlockSpec((wup + 2, w), lambda b, r: (0, 0)),
            pl.BlockSpec((None, hup + 4, w, cin), lambda b, r: (b, 0, 0, 0)),
            pl.BlockSpec((9, cin, cmid), lambda b, r: (0, 0, 0)),
            pl.BlockSpec((1, cmid), lambda b, r: (0, 0)),
            pl.BlockSpec((9, cmid, coutp), lambda b, r: (0, 0, 0)),
            pl.BlockSpec((1, coutp), lambda b, r: (0, 0)),
        ],
        out_specs=pl.BlockSpec((None, R, wup, coutp), lambda b, r: (b, r, 0, 0)),
        scratch_shapes=[
            pltpu.VMEM((R + 4, wup + 2, cin), jnp.bfloat16),    # upsampled rows
            pltpu.VMEM((R + 2, wup + 2, cmid), jnp.bfloat16),   # conv1 output
        ],
        compiler_params=pltpu.CompilerParams(
            dimension_semantics=("parallel", "parallel")),
        cost_estimate=pl.CostEstimate(flops=flops, transcendentals=0,
                                      bytes_accessed=bytes_accessed),
    )(aw_pad, xh, w1t, b1r, w2t, b2r)

    y = y[..., :cout]                                       # drop channel pad
    return jnp.transpose(y, (0, 3, 1, 2))                   # back to NCHW


# ----------------------------------------------------------------------------
# Pure-JAX reference mirroring the kernel's bf16 rounding points.
# ----------------------------------------------------------------------------
def reference_forward(x_nchw, w1, b1, w2, b2, scale=4):
    n, cin, h, w = x_nchw.shape
    hup, wup = scale * h, scale * w
    f32, bf = jnp.float32, jnp.bfloat16
    hp = lax.Precision.HIGHEST

    ah = jnp.asarray(bilinear_resize_matrix(h, hup)).astype(bf).astype(f32)
    aw = jnp.asarray(bilinear_resize_matrix(w, wup)).astype(bf).astype(f32)
    xb = x_nchw.astype(bf).astype(f32)

    xh = jnp.einsum("Hh,nchw->ncHw", ah, xb, precision=hp).astype(bf).astype(f32)
    up = jnp.einsum("Ww,ncHw->ncHW", aw, xh, precision=hp).astype(bf).astype(f32)

    dn = ("NCHW", "OIHW", "NCHW")
    w1b = w1.astype(bf).astype(f32)
    w2b = w2.astype(bf).astype(f32)
    mid = lax.conv_general_dilated(up, w1b, (1, 1), "SAME",
                                   dimension_numbers=dn, precision=hp)
    mid = jnp.maximum(mid + b1[None, :, None, None], 0.0).astype(bf).astype(f32)
    out = lax.conv_general_dilated(mid, w2b, (1, 1), "SAME",
                                   dimension_numbers=dn, precision=hp)
    return out + b2[None, :, None, None]


if __name__ == "__main__":
    # Small config consistent with the module (MID=512 is hardcoded there).
    IN_CHANS, EMBED_DIM, MID = 64, 128, 512
    N, H, W = 2, 8, 8
    SCALE = 4

    key = jax.random.PRNGKey(0)
    kx, kw1, kb1, kw2, kb2 = jax.random.split(key, 5)
    x = jax.random.normal(kx, (N, EMBED_DIM, H, W), jnp.float32)
    w1 = jax.random.normal(kw1, (MID, EMBED_DIM, 3, 3), jnp.float32) * 0.05
    b1 = jax.random.normal(kb1, (MID,), jnp.float32) * 0.05
    w2 = jax.random.normal(kw2, (IN_CHANS, MID, 3, 3), jnp.float32) * 0.05
    b2 = jax.random.normal(kb2, (IN_CHANS,), jnp.float32) * 0.05

    out = jax.block_until_ready(conv_head_forward(x, w1, b1, w2, b2, scale=SCALE))
    assert out.shape == (N, IN_CHANS, SCALE * H, SCALE * W), out.shape

    ref = jax.block_until_ready(reference_forward(x, w1, b1, w2, b2, scale=SCALE))
    np.testing.assert_allclose(np.asarray(out), np.asarray(ref),
                               rtol=1e-2, atol=1e-2)

    print("KERNEL_OK")
</pallas_src>

<mosaic_0001>
module attributes {stable_mosaic.version = 11 : i64} {
  func.func @kernel(%arg0: i32, %arg1: memref<36x8xbf16, #tpu.memory_space<vmem>>, %arg2: memref<1x8x1024xbf16, #tpu.memory_space<vmem>>, %arg3: memref<1x36x1024xbf16, #tpu.memory_space<vmem>>) attributes {dimension_semantics = [#tpu.dimension_semantics<parallel>], iteration_bounds = array<i64: 2>, scalar_prefetch = 0 : i64, scratch_operands = 0 : i64, tpu.core_type = #tpu.core_type<tc>, window_params = [{pipeline_mode = #tpu.pipeline_mode<synchronous>, transform_indices = @transform_0, window_bounds = array<i64: 36, 8>}, {transform_indices = @transform_1, window_bounds = array<i64: 1, 8, 1024>}, {transform_indices = @transform_2, window_bounds = array<i64: 1, 36, 1024>}]} {
    %c0 = arith.constant 0 : index
    %c0_0 = arith.constant 0 : index
    %c0_1 = arith.constant 0 : index
    %0 = vector.load %arg2[%c0, %c0_0, %c0_1] : memref<1x8x1024xbf16, #tpu.memory_space<vmem>>, vector<1x8x1024xbf16>
    %1 = vector.shape_cast %0 : vector<1x8x1024xbf16> to vector<8x1024xbf16>
    %c0_2 = arith.constant 0 : index
    %c0_3 = arith.constant 0 : index
    %2 = vector.load %arg1[%c0_2, %c0_3] : memref<36x8xbf16, #tpu.memory_space<vmem>>, vector<32x8xbf16>
    %cst = arith.constant dense<0.000000e+00> : vector<32x1024xf32>
    %3 = tpu.matmul %2, %1, %cst {dimension_numbers = #tpu.dot_dimension_numbers<[1], [0], [0], [1], [0, 0, 1, 1], [], []>} : vector<32x8xbf16>, vector<8x1024xbf16>, vector<32x1024xf32> -> vector<32x1024xf32>
    %4 = arith.truncf %3 : vector<32x1024xf32> to vector<32x1024xbf16>
    %c0_4 = arith.constant 0 : index
    %c0_5 = arith.constant 0 : index
    %c0_6 = arith.constant 0 : index
    %5 = vector.load %arg3[%c0_4, %c0_5, %c0_6] : memref<1x36x1024xbf16, #tpu.memory_space<vmem>>, vector<1x32x1024xbf16>
    %6 = vector.shape_cast %5 : vector<1x32x1024xbf16> to vector<32x1024xbf16>
    %7 = vector.shape_cast %4 : vector<32x1024xbf16> to vector<1x32x1024xbf16>
    tpu.vector_store %arg3[%c0_4, %c0_5, %c0_6], %7 {strides = array<i32>} : memref<1x36x1024xbf16, #tpu.memory_space<vmem>>, vector<1x32x1024xbf16>,
    %c32 = arith.constant 32 : index
    %c0_7 = arith.constant 0 : index
    %8 = vector.load %arg1[%c32, %c0_7] : memref<36x8xbf16, #tpu.memory_space<vmem>>, vector<4x8xbf16>
    %cst_8 = arith.constant dense<0.000000e+00> : vector<4x1024xf32>
    %9 = tpu.matmul %8, %1, %cst_8 {dimension_numbers = #tpu.dot_dimension_numbers<[1], [0], [0], [1], [0, 0, 1, 1], [], []>} : vector<4x8xbf16>, vector<8x1024xbf16>, vector<4x1024xf32> -> vector<4x1024xf32>
    %10 = arith.truncf %9 : vector<4x1024xf32> to vector<4x1024xbf16>
    %c0_9 = arith.constant 0 : index
    %c32_10 = arith.constant 32 : index
    %c0_11 = arith.constant 0 : index
    %11 = vector.load %arg3[%c0_9, %c32_10, %c0_11] : memref<1x36x1024xbf16, #tpu.memory_space<vmem>>, vector<1x4x1024xbf16>
    %12 = vector.shape_cast %11 : vector<1x4x1024xbf16> to vector<4x1024xbf16>
    %13 = vector.shape_cast %10 : vector<4x1024xbf16> to vector<1x4x1024xbf16>
    tpu.vector_store %arg3[%c0_9, %c32_10, %c0_11], %13 {strides = array<i32>} : memref<1x36x1024xbf16, #tpu.memory_space<vmem>>, vector<1x4x1024xbf16>,
    return
  }
  func.func @transform_0(%arg0: i32) -> (i32, i32) {
    %c0_i32 = arith.constant 0 : i32
    %c0_i32_0 = arith.constant 0 : i32
    %c0_i32_1 = arith.constant 0 : i32
    return %c0_i32, %c0_i32_0 : i32, i32
  }
  func.func @transform_1(%arg0: i32) -> (i32, i32, i32) {
    %c0_i32 = arith.constant 0 : i32
    %c0_i32_0 = arith.constant 0 : i32
    %c0_i32_1 = arith.constant 0 : i32
    return %arg0, %c0_i32, %c0_i32_0 : i32, i32, i32
  }
  func.func @transform_2(%arg0: i32) -> (i32, i32, i32) {
    %c0_i32 = arith.constant 0 : i32
    %c0_i32_0 = arith.constant 0 : i32
    %c0_i32_1 = arith.constant 0 : i32
    return %arg0, %c0_i32, %c0_i32_0 : i32, i32, i32
  }
}

</mosaic_0001>

<llo_original>
// kernel: tpu_custom_call.1
$region0: #{tpu_custom_call.1}
  #allocation0 [shape = 'u32[]', space=smem, size = 0x4, offset = 0x4, fixed_abs, tag = 'smem constant byte address 0x4 - core index']
  #allocation1 [shape = 'u32[144,128]{1,0:T(1,128)}', space=vmem, size = 0x12000, scoped, tag = 'internal scratch']
  %s0 = inlined_call_operand.vmem [shape: bf16[36,8], index: 0, kind: input, shape index: {}]
  %s1 = inlined_call_operand.hbm [shape: bf16[2,8,1024], index: 1, kind: input, shape index: {}]
  %s2 = inlined_call_operand.vmem [shape: bf16[2,36,1024], index: 2, kind: output, shape index: {}]
  %s3 = sld [smem:[#allocation0]]
  $region45: #{tpu_custom_call.1} parent=0
    _
  %s5 = ssub.s32 1, %s3
  %s6 = scalar_select 0, %s5, %s3
  $region1: #{tpu_custom_call.1} parent=0
    #allocation2 [shape = 'u8[32768]{0}', space=vmem, size = 0x8000, scoped, tag = 'input window, operand 1']
    #allocation3 [shape = 's32[2]{0}', space=sflag, size = 0x8, scoped, tag = 'scoped memory for tpu_custom_call.1']
    %7 = vsyncpa [#allocation3], 0
    %s8 = scalar_lea.sflag [#allocation3], 1
    %9 = vsyncpa %s8, 0
    loop: start=0, step=1, limit=4
    $region2: #{tpu_custom_call.1} parent=1 // loop_pre_header
      _
    $region3: #{tpu_custom_call.1} parent=1 // loop_header
      %s11 = sphi 0, %s15
      %p12 = scmp.ge.s32.totalorder %s11, 4
      %s19 = sphi 0, %s19
      %s21 = sphi 0, %s19
      %s22 = sphi 0, %s21
      %s36 = sphi 0, %s22
      %s42 = sphi 0, %s44
      %s45 = sphi 0, %s42
      %s46 = sphi 0, %s45
      %s62 = sphi 0, %s46
      %s68 = sphi 0, %s70
      %s71 = sphi 0, %s68
      %s72 = sphi 0, %s71
      %s88 = sphi 0, %s72
    $region4: #{tpu_custom_call.1} parent=1 // loop_header_branch
      %14 = sbr.rel (%p12) target = $region8
    $region5: #{tpu_custom_call.1} parent=1 // loop_body
      %s16 = ssub.s32 %s11, 1
      %s17 = ssub.s32 %s11, 2
      %s18 = sadd.s32 %s11, 1
      %s20 = sadd.s32 %s19, 1
      %p23 = scmp.eq.s32.totalorder %s11, 1
      %p24 = scmp.ne.s32.totalorder %s19, %s21
      %p25 = scmp.eq.s32.totalorder %s11, 0
      %p26 = por %p24, %p25
      %p27 = scmp.ne.s32.totalorder %s19, %s21
      %p28 = scmp.eq.s32.totalorder %s16, 1
      %p29 = por %p27, %p28
      %p30 = scmp.ne.s32.totalorder %s21, %s22
      %p31 = scmp.eq.s32.totalorder %s16, 0
      %p32 = por %p30, %p31
      %p33 = scmp.ne.s32.totalorder %s21, %s22
      %p34 = scmp.eq.s32.totalorder %s17, 1
      %p35 = por %p33, %p34
      %p37 = scmp.ne.s32.totalorder %s22, %s36
      %p38 = scmp.eq.s32.totalorder %s17, 0
      %p39 = por %p37, %p38
      %s40 = ssub.s32 %s11, %s18
      %p41 = scmp.eq.s32.totalorder %s40, 0
      %s43 = sadd.s32 %s42, 1
      %s44 = scalar_select %p41, %s42, %s43
      %p47 = pneg %p41
      %p48 = scmp.eq.s32.totalorder %s11, 1
      %p49 = por %p47, %p48
      %p50 = scmp.ne.s32.totalorder %s42, %s45
      %p51 = scmp.eq.s32.totalorder %s11, 0
      %p52 = por %p50, %p51
      %p53 = scmp.ne.s32.totalorder %s42, %s45
      %p54 = scmp.eq.s32.totalorder %s16, 1
      %p55 = por %p53, %p54
      %p56 = scmp.ne.s32.totalorder %s45, %s46
      %p57 = scmp.eq.s32.totalorder %s16, 0
      %p58 = por %p56, %p57
      %p59 = scmp.ne.s32.totalorder %s45, %s46
      %p60 = scmp.eq.s32.totalorder %s17, 1
      %p61 = por %p59, %p60
      %p63 = scmp.ne.s32.totalorder %s46, %s62
      %p64 = scmp.eq.s32.totalorder %s17, 0
      %p65 = por %p63, %p64
      %s66 = ssub.s32 %s11, %s18
      %p67 = scmp.eq.s32.totalorder %s66, 0
      %s69 = sadd.s32 %s68, 1
      %s70 = scalar_select %p67, %s68, %s69
      %p73 = pneg %p67
      %p74 = scmp.eq.s32.totalorder %s11, 1
      %p75 = por %p73, %p74
      %p76 = scmp.ne.s32.totalorder %s68, %s71
      %p77 = scmp.eq.s32.totalorder %s11, 0
      %p78 = por %p76, %p77
      %p79 = scmp.ne.s32.totalorder %s68, %s71
      %p80 = scmp.eq.s32.totalorder %s16, 1
      %p81 = por %p79, %p80
      %p82 = scmp.ne.s32.totalorder %s71, %s72
      %p83 = scmp.eq.s32.totalorder %s16, 0
      %p84 = por %p82, %p83
      %p85 = scmp.ne.s32.totalorder %s71, %s72
      %p86 = scmp.eq.s32.totalorder %s17, 1
      %p87 = por %p85, %p86
      %p89 = scmp.ne.s32.totalorder %s72, %s88
      %p90 = scmp.eq.s32.totalorder %s17, 0
      %p91 = por %p89, %p90
      %p92 = scmp.le.s32.totalorder 1, %s11
      %p93 = scmp.lt.s32.totalorder %s11, 3
      %p94 = pnand %p92, %p93
      %p95 = pneg %p94
      // Predicated region
      $region9: #{tpu_custom_call.1} parent=5 // pred_check
        _
      $region10: #{tpu_custom_call.1} parent=5 // pred_check_branch
        %97 = sbr.rel (%p94) target = $region12
      $region11: #{tpu_custom_call.1} parent=5 // pred_region
        %s98 = ssub.s32 %s11, 1
        // Predicated region
        $region13: #{tpu_custom_call.1} parent=11 // pred_check
          %p99 = pneg %p32
        $region14: #{tpu_custom_call.1} parent=11 // pred_check_branch
          %101 = sbr.rel (%p99) target = $region16
        $region15: #{tpu_custom_call.1} parent=11 // pred_region
          _
        $region16: #{tpu_custom_call.1} parent=11 // pred_fallthru
          _
      $region12: #{tpu_custom_call.1} parent=5 // pred_fallthru
        _
      %p102 = scmp.lt.s32.totalorder %s11, 2
      // Predicated region
      $region17: #{tpu_custom_call.1} parent=5 // pred_check
        %p103 = pneg %p102
      $region18: #{tpu_custom_call.1} parent=5 // pred_check_branch
        %105 = sbr.rel (%p103) target = $region20
      $region19: #{tpu_custom_call.1} parent=5 // pred_region
        // Predicated region
        $region21: #{tpu_custom_call.1} parent=19 // pred_check
          %p106 = pneg %p52
        $region22: #{tpu_custom_call.1} parent=19 // pred_check_branch
          %108 = sbr.rel (%p106) target = $region24
        $region23: #{tpu_custom_call.1} parent=19 // pred_region
          %s109 = sand.u32 %s42, 1
          %s110 = scalar_lea.sflag [#allocation3], %s109
          %s111 = sand.u32 %s42, 1
          %s112 = smul.addr %s111, 32
          %s113 = scalar_lea.vmem [#allocation2], %s112
          %s115 = ssub.s32 512, 512
          %116 = vsyncadd %s110, %s115
          %s117 = smul.addr %s11, 8
          %s118 = smul.addr %s117, 64
          %s119 = scalar_lea.hbm %s1, %s118
          %s121 = sshll.u32 %s113, 4
          %s122 = int_to_ptr.vmem [resolvable:$true] %s121
          %124 = dma.hbm_to_vmem [thread:$0]  %s119, 512, %s122, %s110
        $region24: #{tpu_custom_call.1} parent=19 // pred_fallthru
          _
      $region20: #{tpu_custom_call.1} parent=5 // pred_fallthru
        _
      %p125 = scmp.le.s32.totalorder 1, %s11
      %p126 = scmp.lt.s32.totalorder %s11, 3
      %p127 = pnand %p125, %p126
      %p128 = pneg %p127
      // Predicated region
      $region25: #{tpu_custom_call.1} parent=5 // pred_check
        _
      $region26: #{tpu_custom_call.1} parent=5 // pred_check_branch
        %130 = sbr.rel (%p127) target = $region28
      $region27: #{tpu_custom_call.1} parent=5 // pred_region
        %s131 = ssub.s32 %s11, 1
        %s132 = sand.u32 %s45, 1
        %s133 = scalar_lea.sflag [#allocation3], %s132
        %s134 = sand.u32 %s45, 1
        %s135 = smul.addr %s134, 32
        %s136 = scalar_lea.vmem [#allocation2], %s135
        // Predicated region
        $region29: #{tpu_custom_call.1} parent=27 // pred_check
          %p137 = pneg %p58
        $region30: #{tpu_custom_call.1} parent=27 // pred_check_branch
          %139 = sbr.rel (%p137) target = $region32
        $region31: #{tpu_custom_call.1} parent=27 // pred_region
          %140 = dma.done %s133, 512
        $region32: #{tpu_custom_call.1} parent=27 // pred_fallthru
          _
        %p141 = pneg %p32
        %p142 = pneg %p29
        %s143 = sand.u32 %s45, 1
        %s144 = scalar_lea.sflag [#allocation3], %s143
        %s145 = sand.u32 %s45, 1
        %s146 = smul.addr %s145, 32
        %s147 = scalar_lea.vmem [#allocation2], %s146
        %p148 = pneg %p58
        %p149 = pneg %p55
        %p150 = pneg %p84
        %p151 = pneg %p81
        %p152 = scmp.lt.s32.totalorder %s16, 1
        %s153 = scalar_select %p152, %s16, 1
        %s154 = smul.addr %s153, 40
        %s155 = smul.addr %s154, 4
        %s156 = scalar_lea.vmem %s2, %s155
        %p157 = scmp.lt.s32.totalorder %s16, 1
        %s158 = scalar_select %p157, %s16, 1
        %s159 = smul.addr %s158, 40
        %s160 = smul.addr %s159, 4
        %s161 = scalar_lea.vmem %s2, %s160
        %v163 = vld [vmem:[%s136] sm:$0xff]
        %v164 = vld [vmem:[%s136 + $0x8] sm:$0xff]
        %v165 = vld [vmem:[%s136 + $0x10] sm:$0xff]
        %v166 = vld [vmem:[%s136 + $0x18] sm:$0xff]
        %v167 = vld [vmem:[%s0] sm:$0xf]
        %v168 = vld [vmem:[%s0 + $0x4] sm:$0xf]
        %v169 = vld [vmem:[%s0 + $0x8] sm:$0xf]
        %v170 = vld [vmem:[%s0 + $0xc] sm:$0xf]
        %v175 = vunpack.c.l.b16 %v167
        %v176 = vunpack.c.l.b16 %v168
        %v177 = vunpack.c.l.b16 %v169
        %v178 = vunpack.c.l.b16 %v170
        %v179 = vpack.c.b16 %v176, %v175
        %v180 = vpack.c.b16 %v178, %v177
        %v185 = vunpack.c.l.b16 %v163
        %v186 = vunpack.c.h.b16 %v163
        %v187 = vunpack.c.l.b16 %v164
        %v188 = vunpack.c.h.b16 %v164
        %v189 = vunpack.c.l.b16 %v165
        %v190 = vunpack.c.h.b16 %v165
        %v191 = vunpack.c.l.b16 %v166
        %v192 = vunpack.c.h.b16 %v166
        %v193 = vpack.c.b16 %v185, %v185
        %v194 = vpack.c.b16 %v186, %v186
        %v195 = vpack.c.b16 %v187, %v187
        %v196 = vpack.c.b16 %v188, %v188
        %v197 = vpack.c.b16 %v189, %v189
        %v198 = vpack.c.b16 %v190, %v190
        %v199 = vpack.c.b16 %v191, %v191
        %v200 = vpack.c.b16 %v192, %v192
        %vm201 = vcmask 64512
        %v203 = vsel %vm201, %v179, 0
        %v206 = vsel %vm201, %v180, 0
        %vm208 = vcmask 1043456
        %v210 = vsel %vm208, %v193, 0
        %v213 = vsel %vm208, %v194, 0
        %v216 = vsel %vm208, %v195, 0
        %v219 = vsel %vm208, %v196, 0
        %v222 = vsel %vm208, %v197, 0
        %v225 = vsel %vm208, %v198, 0
        %v228 = vsel %vm208, %v199, 0
        %v231 = vsel %vm208, %v200, 0
        %233 = vmatprep.subr.bf16.mxu0 %v213
        %234 = vmatpush1.bf16.msra.mxu0 %v210
        %235 = vmatprep.subr.bf16.mxu0 0
        %236 = vmatpush1.bf16.msra.mxu0 0
        %237 = vmatprep.subr.bf16.mxu0 0
        %238 = vmatpush1.bf16.msra.mxu0 0
        %239 = vmatprep.subr.bf16.mxu0 0
        %240 = vmatpush1.bf16.msra.mxu0 0
        %241 = vmatprep.subr.bf16.mxu0 0
        %242 = vmatpush1.bf16.msra.mxu0 0
        %243 = vmatprep.subr.bf16.mxu0 0
        %244 = vmatpush1.bf16.msra.mxu0 0
        %245 = vmatprep.subr.bf16.mxu0 0
        %246 = vmatpush1.bf16.msra.mxu0 0
        %247 = vmatprep.subr.bf16.mxu0 0
        %248 = vmatpush1.bf16.msra.mxu0 0
        %249 = vmatprep.subr.bf16.mxu0 0
        %250 = vmatpush1.bf16.msra.mxu0 0
        %251 = vmatprep.subr.bf16.mxu0 0
        %252 = vmatpush1.bf16.msra.mxu0 0
        %253 = vmatprep.subr.bf16.mxu0 0
        %254 = vmatpush1.bf16.msra.mxu0 0
        %255 = vmatprep.subr.bf16.mxu0 0
        %256 = vmatpush1.bf16.msra.mxu0 0
        %257 = vmatprep.subr.bf16.mxu0 0
        %258 = vmatpush1.bf16.msra.mxu0 0
        %259 = vmatprep.subr.bf16.mxu0 0
        %260 = vmatpush1.bf16.msra.mxu0 0
        %261 = vmatprep.subr.bf16.mxu0 0
        %262 = vmatpush1.bf16.msra.mxu0 0
        %263 = vmatprep.subr.bf16.mxu0 0
        %264 = vmatpush1.bf16.msra.mxu0 0
        %265 = vmatprep.mubr.bf16.mxu0 0
        %266 = vmatmul.mubr.bf16.gmra.mrb[0].mxu0 %v203
        %v267 = vpop.f32.mrb[0].mxu0
        %v268 = vadd.f32 0.0, %v267
        %v269 = vpop.f32.mrb[0].mxu0
        %v270 = vadd.f32 0.0, %v269
        %v271 = vpop.f32.mrb[0].mxu0
        %v272 = vadd.f32 0.0, %v271
        %v273 = vpop.f32.mrb[0].mxu0
        %v274 = vadd.f32 0.0, %v273
        %275 = vmatprep.mubr.bf16.mxu0 0
        %276 = vmatmul.mubr.bf16.gmra.mrb[0].mxu0 %v206
        %v277 = vpop.f32.mrb[0].mxu0
        %v278 = vadd.f32 0.0, %v277
        %v279 = vpop.f32.mrb[0].mxu0
        %v280 = vadd.f32 0.0, %v279
        %v281 = vpop.f32.mrb[0].mxu0
        %v282 = vadd.f32 0.0, %v281
        %v283 = vpop.f32.mrb[0].mxu0
        %v284 = vadd.f32 0.0, %v283
        %285 = vdwg.mxu0
        %286 = vmatprep.subr.bf16.mxu0 %v219
        %287 = vmatpush1.bf16.msra.mxu0 %v216
        %288 = vmatprep.subr.bf16.mxu0 0
        %289 = vmatpush1.bf16.msra.mxu0 0
        %290 = vmatprep.subr.bf16.mxu0 0
        %291 = vmatpush1.bf16.msra.mxu0 0
        %292 = vmatprep.subr.bf16.mxu0 0
        %293 = vmatpush1.bf16.msra.mxu0 0
        %294 = vmatprep.subr.bf16.mxu0 0
        %295 = vmatpush1.bf16.msra.mxu0 0
        %296 = vmatprep.subr.bf16.mxu0 0
        %297 = vmatpush1.bf16.msra.mxu0 0
        %298 = vmatprep.subr.bf16.mxu0 0
        %299 = vmatpush1.bf16.msra.mxu0 0
        %300 = vmatprep.subr.bf16.mxu0 0
        %301 = vmatpush1.bf16.msra.mxu0 0
        %302 = vmatprep.subr.bf16.mxu0 0
        %303 = vmatpush1.bf16.msra.mxu0 0
        %304 = vmatprep.subr.bf16.mxu0 0
        %305 = vmatpush1.bf16.msra.mxu0 0
        %306 = vmatprep.subr.bf16.mxu0 0
        %307 = vmatpush1.bf16.msra.mxu0 0
        %308 = vmatprep.subr.bf16.mxu0 0
        %309 = vmatpush1.bf16.msra.mxu0 0
        %310 = vmatprep.subr.bf16.mxu0 0
        %311 = vmatpush1.bf16.msra.mxu0 0
        %312 = vmatprep.subr.bf16.mxu0 0
        %313 = vmatpush1.bf16.msra.mxu0 0
        %314 = vmatprep.subr.bf16.mxu0 0
        %315 = vmatpush1.bf16.msra.mxu0 0
        %316 = vmatprep.subr.bf16.mxu0 0
        %317 = vmatpush1.bf16.msra.mxu0 0
        %318 = vmatprep.mubr.bf16.mxu0 0
        %319 = vmatmul.mubr.bf16.gmra.mrb[0].mxu0 %v203
        %v320 = vpop.f32.mrb[0].mxu0
        %v321 = vadd.f32 0.0, %v320
        %v322 = vpop.f32.mrb[0].mxu0
        %v323 = vadd.f32 0.0, %v322
        %v324 = vpop.f32.mrb[0].mxu0
        %v325 = vadd.f32 0.0, %v324
        %v326 = vpop.f32.mrb[0].mxu0
        %v327 = vadd.f32 0.0, %v326
        %328 = vmatprep.mubr.bf16.mxu0 0
        %329 = vmatmul.mubr.bf16.gmra.mrb[0].mxu0 %v206
        %v330 = vpop.f32.mrb[0].mxu0
        %v331 = vadd.f32 0.0, %v330
        %v332 = vpop.f32.mrb[0].mxu0
        %v333 = vadd.f32 0.0, %v332
        %v334 = vpop.f32.mrb[0].mxu0
        %v335 = vadd.f32 0.0, %v334
        %v336 = vpop.f32.mrb[0].mxu0
        %v337 = vadd.f32 0.0, %v336
        %338 = vdwg.mxu0
        %339 = vmatprep.subr.bf16.mxu0 %v225
        %340 = vmatpush1.bf16.msra.mxu0 %v222
        %341 = vmatprep.subr.bf16.mxu0 0
        %342 = vmatpush1.bf16.msra.mxu0 0
        %343 = vmatprep.subr.bf16.mxu0 0
        %344 = vmatpush1.bf16.msra.mxu0 0
        %345 = vmatprep.subr.bf16.mxu0 0
        %346 = vmatpush1.bf16.msra.mxu0 0
        %347 = vmatprep.subr.bf16.mxu0 0
        %348 = vmatpush1.bf16.msra.mxu0 0
        %349 = vmatprep.subr.bf16.mxu0 0
        %350 = vmatpush1.bf16.msra.mxu0 0
        %351 = vmatprep.subr.bf16.mxu0 0
        %352 = vmatpush1.bf16.msra.mxu0 0
        %353 = vmatprep.subr.bf16.mxu0 0
        %354 = vmatpush1.bf16.msra.mxu0 0
        %355 = vmatprep.subr.bf16.mxu0 0
        %356 = vmatpush1.bf16.msra.mxu0 0
        %357 = vmatprep.subr.bf16.mxu0 0
        %358 = vmatpush1.bf16.msra.mxu0 0
        %359 = vmatprep.subr.bf16.mxu0 0
        %360 = vmatpush1.bf16.msra.mxu0 0
        %361 = vmatprep.subr.bf16.mxu0 0
        %362 = vmatpush1.bf16.msra.mxu0 0
        %363 = vmatprep.subr.bf16.mxu0 0
        %364 = vmatpush1.bf16.msra.mxu0 0
        %365 = vmatprep.subr.bf16.mxu0 0
        %366 = vmatpush1.bf16.msra.mxu0 0
        %367 = vmatprep.subr.bf16.mxu0 0
        %368 = vmatpush1.bf16.msra.mxu0 0
        %369 = vmatprep.subr.bf16.mxu0 0
        %370 = vmatpush1.bf16.msra.mxu0 0
        %371 = vmatprep.mubr.bf16.mxu0 0
        %372 = vmatmul.mubr.bf16.gmra.mrb[0].mxu0 %v203
        %v373 = vpop.f32.mrb[0].mxu0
        %v374 = vadd.f32 0.0, %v373
        %v375 = vpop.f32.mrb[0].mxu0
        %v376 = vadd.f32 0.0, %v375
        %v377 = vpop.f32.mrb[0].mxu0
        %v378 = vadd.f32 0.0, %v377
        %v379 = vpop.f32.mrb[0].mxu0
        %v380 = vadd.f32 0.0, %v379
        %381 = vmatprep.mubr.bf16.mxu0 0
        %382 = vmatmul.mubr.bf16.gmra.mrb[0].mxu0 %v206
        %v383 = vpop.f32.mrb[0].mxu0
        %v384 = vadd.f32 0.0, %v383
        %v385 = vpop.f32.mrb[0].mxu0
        %v386 = vadd.f32 0.0, %v385
        %v387 = vpop.f32.mrb[0].mxu0
        %v388 = vadd.f32 0.0, %v387
        %v389 = vpop.f32.mrb[0].mxu0
        %v390 = vadd.f32 0.0, %v389
        %391 = vdwg.mxu0
        %392 = vmatprep.subr.bf16.mxu0 %v231
        %393 = vmatpush1.bf16.msra.mxu0 %v228
        %394 = vmatprep.subr.bf16.mxu0 0
        %395 = vmatpush1.bf16.msra.mxu0 0
        %396 = vmatprep.subr.bf16.mxu0 0
        %397 = vmatpush1.bf16.msra.mxu0 0
        %398 = vmatprep.subr.bf16.mxu0 0
        %399 = vmatpush1.bf16.msra.mxu0 0
        %400 = vmatprep.subr.bf16.mxu0 0
        %401 = vmatpush1.bf16.msra.mxu0 0
        %402 = vmatprep.subr.bf16.mxu0 0
        %403 = vmatpush1.bf16.msra.mxu0 0
        %404 = vmatprep.subr.bf16.mxu0 0
        %405 = vmatpush1.bf16.msra.mxu0 0
        %406 = vmatprep.subr.bf16.mxu0 0
        %407 = vmatpush1.bf16.msra.mxu0 0
        %408 = vmatprep.subr.bf16.mxu0 0
        %409 = vmatpush1.bf16.msra.mxu0 0
        %410 = vmatprep.subr.bf16.mxu0 0
        %411 = vmatpush1.bf16.msra.mxu0 0
        %412 = vmatprep.subr.bf16.mxu0 0
        %413 = vmatpush1.bf16.msra.mxu0 0
        %414 = vmatprep.subr.bf16.mxu0 0
        %415 = vmatpush1.bf16.msra.mxu0 0
        %416 = vmatprep.subr.bf16.mxu0 0
        %417 = vmatpush1.bf16.msra.mxu0 0
        %418 = vmatprep.subr.bf16.mxu0 0
        %419 = vmatpush1.bf16.msra.mxu0 0
        %420 = vmatprep.subr.bf16.mxu0 0
        %421 = vmatpush1.bf16.msra.mxu0 0
        %422 = vmatprep.subr.bf16.mxu0 0
        %423 = vmatpush1.bf16.msra.mxu0 0
        %424 = vmatprep.mubr.bf16.mxu0 0
        %425 = vmatmul.mubr.bf16.gmra.mrb[0].mxu0 %v203
        %v426 = vpop.f32.mrb[0].mxu0
        %v427 = vadd.f32 0.0, %v426
        %v428 = vpop.f32.mrb[0].mxu0
        %v429 = vadd.f32 0.0, %v428
        %v430 = vpop.f32.mrb[0].mxu0
        %v431 = vadd.f32 0.0, %v430
        %v432 = vpop.f32.mrb[0].mxu0
        %v433 = vadd.f32 0.0, %v432
        %434 = vmatprep.mubr.bf16.mxu0 0
        %435 = vmatmul.mubr.bf16.gmra.mrb[0].mxu0 %v206
        %v436 = vpop.f32.mrb[0].mxu0
        %v437 = vadd.f32 0.0, %v436
        %v438 = vpop.f32.mrb[0].mxu0
        %v439 = vadd.f32 0.0, %v438
        %v440 = vpop.f32.mrb[0].mxu0
        %v441 = vadd.f32 0.0, %v440
        %v442 = vpop.f32.mrb[0].mxu0
        %v443 = vadd.f32 0.0, %v442
        %444 = vdwg.mxu0
        %v445 = vpack.c.bf16 %v272, %v268
        %v446 = vpack.c.bf16 %v274, %v270
        %v447 = vpack.c.bf16 %v325, %v321
        %v448 = vpack.c.bf16 %v327, %v323
        %v449 = vpack.c.bf16 %v378, %v374
        %v450 = vpack.c.bf16 %v380, %v376
        %v451 = vpack.c.bf16 %v431, %v427
        %v452 = vpack.c.bf16 %v433, %v429
        %v453 = vpack.c.bf16 %v282, %v278
        %v454 = vpack.c.bf16 %v284, %v280
        %v455 = vpack.c.bf16 %v335, %v331
        %v456 = vpack.c.bf16 %v337, %v333
        %v457 = vpack.c.bf16 %v388, %v384
        %v458 = vpack.c.bf16 %v390, %v386
        %v459 = vpack.c.bf16 %v441, %v437
        %v460 = vpack.c.bf16 %v443, %v439
        %v477 = vunpack.c.l.b16 %v445
        %v478 = vunpack.c.l.b16 %v446
        %v479 = vunpack.c.l.b16 %v447
        %v480 = vunpack.c.l.b16 %v448
        %v481 = vunpack.c.l.b16 %v449
        %v482 = vunpack.c.l.b16 %v450
        %v483 = vunpack.c.l.b16 %v451
        %v484 = vunpack.c.l.b16 %v452
        %v485 = vunpack.c.h.b16 %v445
        %v486 = vunpack.c.h.b16 %v446
        %v487 = vunpack.c.h.b16 %v447
        %v488 = vunpack.c.h.b16 %v448
        %v489 = vunpack.c.h.b16 %v449
        %v490 = vunpack.c.h.b16 %v450
        %v491 = vunpack.c.h.b16 %v451
        %v492 = vunpack.c.h.b16 %v452
        %v493 = vunpack.c.l.b16 %v453
        %v494 = vunpack.c.l.b16 %v454
        %v495 = vunpack.c.l.b16 %v455
        %v496 = vunpack.c.l.b16 %v456
        %v497 = vunpack.c.l.b16 %v457
        %v498 = vunpack.c.l.b16 %v458
        %v499 = vunpack.c.l.b16 %v459
        %v500 = vunpack.c.l.b16 %v460
        %v501 = vunpack.c.h.b16 %v453
        %v502 = vunpack.c.h.b16 %v454
        %v503 = vunpack.c.h.b16 %v455
        %v504 = vunpack.c.h.b16 %v456
        %v505 = vunpack.c.h.b16 %v457
        %v506 = vunpack.c.h.b16 %v458
        %v507 = vunpack.c.h.b16 %v459
        %v508 = vunpack.c.h.b16 %v460
        %v509 = vpack.c.b16 %v478, %v477
        %v510 = vpack.c.b16 %v480, %v479
        %v511 = vpack.c.b16 %v482, %v481
        %v512 = vpack.c.b16 %v484, %v483
        %v513 = vpack.c.b16 %v486, %v485
        %v514 = vpack.c.b16 %v488, %v487
        %v515 = vpack.c.b16 %v490, %v489
        %v516 = vpack.c.b16 %v492, %v491
        %v517 = vpack.c.b16 %v494, %v493
        %v518 = vpack.c.b16 %v496, %v495
        %v519 = vpack.c.b16 %v498, %v497
        %v520 = vpack.c.b16 %v500, %v499
        %v521 = vpack.c.b16 %v502, %v501
        %v522 = vpack.c.b16 %v504, %v503
        %v523 = vpack.c.b16 %v506, %v505
        %v524 = vpack.c.b16 %v508, %v507
        %541 = vst [vmem:[%s161] sm:$0xff] %v509
        %542 = vst [vmem:[%s161 + $0x8] sm:$0xff] %v510
        %543 = vst [vmem:[%s161 + $0x10] sm:$0xff] %v511
        %544 = vst [vmem:[%s161 + $0x18] sm:$0xff] %v512
        %545 = vst [vmem:[%s161 + $0x20] sm:$0xff] %v513
        %546 = vst [vmem:[%s161 + $0x28] sm:$0xff] %v514
        %547 = vst [vmem:[%s161 + $0x30] sm:$0xff] %v515
        %548 = vst [vmem:[%s161 + $0x38] sm:$0xff] %v516
        %549 = vst [vmem:[%s161 + $0x40] sm:$0xff] %v517
        %550 = vst [vmem:[%s161 + $0x48] sm:$0xff] %v518
        %551 = vst [vmem:[%s161 + $0x50] sm:$0xff] %v519
        %552 = vst [vmem:[%s161 + $0x58] sm:$0xff] %v520
        %553 = vst [vmem:[%s161 + $0x60] sm:$0xff] %v521
        %554 = vst [vmem:[%s161 + $0x68] sm:$0xff] %v522
        %555 = vst [vmem:[%s161 + $0x70] sm:$0xff] %v523
        %556 = vst [vmem:[%s161 + $0x78] sm:$0xff] %v524
        %v557 = vld [vmem:[%s0 + $0x10] sm:$0x3]
        %v559 = vsel %vm201, %v557, 0
        %561 = vmatprep.subr.bf16.mxu0 %v213
        %562 = vmatpush1.bf16.msra.mxu0 %v210
        %563 = vmatprep.subr.bf16.mxu0 0
        %564 = vmatpush1.bf16.msra.mxu0 0
        %565 = vmatprep.subr.bf16.mxu0 0
        %566 = vmatpush1.bf16.msra.mxu0 0
        %567 = vmatprep.subr.bf16.mxu0 0
        %568 = vmatpush1.bf16.msra.mxu0 0
        %569 = vmatprep.subr.bf16.mxu0 0
        %570 = vmatpush1.bf16.msra.mxu0 0
        %571 = vmatprep.subr.bf16.mxu0 0
        %572 = vmatpush1.bf16.msra.mxu0 0
        %573 = vmatprep.subr.bf16.mxu0 0
        %574 = vmatpush1.bf16.msra.mxu0 0
        %575 = vmatprep.subr.bf16.mxu0 0
        %576 = vmatpush1.bf16.msra.mxu0 0
        %577 = vmatprep.subr.bf16.mxu0 0
        %578 = vmatpush1.bf16.msra.mxu0 0
        %579 = vmatprep.subr.bf16.mxu0 0
        %580 = vmatpush1.bf16.msra.mxu0 0
        %581 = vmatprep.subr.bf16.mxu0 0
        %582 = vmatpush1.bf16.msra.mxu0 0
        %583 = vmatprep.subr.bf16.mxu0 0
        %584 = vmatpush1.bf16.msra.mxu0 0
        %585 = vmatprep.subr.bf16.mxu0 0
        %586 = vmatpush1.bf16.msra.mxu0 0
        %587 = vmatprep.subr.bf16.mxu0 0
        %588 = vmatpush1.bf16.msra.mxu0 0
        %589 = vmatprep.subr.bf16.mxu0 0
        %590 = vmatpush1.bf16.msra.mxu0 0
        %591 = vmatprep.subr.bf16.mxu0 0
        %592 = vmatpush1.bf16.msra.mxu0 0
        %593 = vmatprep.mubr.bf16.mxu0 0
        %594 = vmatmul.mubr.bf16.gmra.mrb[0].mxu0 %v559
        %v595 = vpop.f32.mrb[0].mxu0
        %v596 = vadd.f32 0.0, %v595
        %v597 = vpop.f32.mrb[0].mxu0
        %v598 = vadd.f32 0.0, %v597
        %v599 = vpop.f32.mrb[0].mxu0
        %v600 = vpop.f32.mrb[0].mxu0
        %601 = vdwg.mxu0
        %602 = vmatprep.subr.bf16.mxu0 %v219
        %603 = vmatpush1.bf16.msra.mxu0 %v216
        %604 = vmatprep.subr.bf16.mxu0 0
        %605 = vmatpush1.bf16.msra.mxu0 0
        %606 = vmatprep.subr.bf16.mxu0 0
        %607 = vmatpush1.bf16.msra.mxu0 0
        %608 = vmatprep.subr.bf16.mxu0 0
        %609 = vmatpush1.bf16.msra.mxu0 0
        %610 = vmatprep.subr.bf16.mxu0 0
        %611 = vmatpush1.bf16.msra.mxu0 0
        %612 = vmatprep.subr.bf16.mxu0 0
        %613 = vmatpush1.bf16.msra.mxu0 0
        %614 = vmatprep.subr.bf16.mxu0 0
        %615 = vmatpush1.bf16.msra.mxu0 0
        %616 = vmatprep.subr.bf16.mxu0 0
        %617 = vmatpush1.bf16.msra.mxu0 0
        %618 = vmatprep.subr.bf16.mxu0 0
        %619 = vmatpush1.bf16.msra.mxu0 0
        %620 = vmatprep.subr.bf16.mxu0 0
        %621 = vmatpush1.bf16.msra.mxu0 0
        %622 = vmatprep.subr.bf16.mxu0 0
        %623 = vmatpush1.bf16.msra.mxu0 0
        %624 = vmatprep.subr.bf16.mxu0 0
        %625 = vmatpush1.bf16.msra.mxu0 0
        %626 = vmatprep.subr.bf16.mxu0 0
        %627 = vmatpush1.bf16.msra.mxu0 0
        %628 = vmatprep.subr.bf16.mxu0 0
        %629 = vmatpush1.bf16.msra.mxu0 0
        %630 = vmatprep.subr.bf16.mxu0 0
        %631 = vmatpush1.bf16.msra.mxu0 0
        %632 = vmatprep.subr.bf16.mxu0 0
        %633 = vmatpush1.bf16.msra.mxu0 0
        %634 = vmatprep.mubr.bf16.mxu0 0
        %635 = vmatmul.mubr.bf16.gmra.mrb[0].mxu0 %v559
        %v636 = vpop.f32.mrb[0].mxu0
        %v637 = vadd.f32 0.0, %v636
        %v638 = vpop.f32.mrb[0].mxu0
        %v639 = vadd.f32 0.0, %v638
        %v640 = vpop.f32.mrb[0].mxu0
        %v641 = vpop.f32.mrb[0].mxu0
        %642 = vdwg.mxu0
        %643 = vmatprep.subr.bf16.mxu0 %v225
        %644 = vmatpush1.bf16.msra.mxu0 %v222
        %645 = vmatprep.subr.bf16.mxu0 0
        %646 = vmatpush1.bf16.msra.mxu0 0
        %647 = vmatprep.subr.bf16.mxu0 0
        %648 = vmatpush1.bf16.msra.mxu0 0
        %649 = vmatprep.subr.bf16.mxu0 0
        %650 = vmatpush1.bf16.msra.mxu0 0
        %651 = vmatprep.subr.bf16.mxu0 0
        %652 = vmatpush1.bf16.msra.mxu0 0
        %653 = vmatprep.subr.bf16.mxu0 0
        %654 = vmatpush1.bf16.msra.mxu0 0
        %655 = vmatprep.subr.bf16.mxu0 0
        %656 = vmatpush1.bf16.msra.mxu0 0
        %657 = vmatprep.subr.bf16.mxu0 0
        %658 = vmatpush1.bf16.msra.mxu0 0
        %659 = vmatprep.subr.bf16.mxu0 0
        %660 = vmatpush1.bf16.msra.mxu0 0
        %661 = vmatprep.subr.bf16.mxu0 0
        %662 = vmatpush1.bf16.msra.mxu0 0
        %663 = vmatprep.subr.bf16.mxu0 0
        %664 = vmatpush1.bf16.msra.mxu0 0
        %665 = vmatprep.subr.bf16.mxu0 0
        %666 = vmatpush1.bf16.msra.mxu0 0
        %667 = vmatprep.subr.bf16.mxu0 0
        %668 = vmatpush1.bf16.msra.mxu0 0
        %669 = vmatprep.subr.bf16.mxu0 0
        %670 = vmatpush1.bf16.msra.mxu0 0
        %671 = vmatprep.subr.bf16.mxu0 0
        %672 = vmatpush1.bf16.msra.mxu0 0
        %673 = vmatprep.subr.bf16.mxu0 0
        %674 = vmatpush1.bf16.msra.mxu0 0
        %675 = vmatprep.mubr.bf16.mxu0 0
        %676 = vmatmul.mubr.bf16.gmra.mrb[0].mxu0 %v559
        %v677 = vpop.f32.mrb[0].mxu0
        %v678 = vadd.f32 0.0, %v677
        %v679 = vpop.f32.mrb[0].mxu0
        %v680 = vadd.f32 0.0, %v679
        %v681 = vpop.f32.mrb[0].mxu0
        %v682 = vpop.f32.mrb[0].mxu0
        %683 = vdwg.mxu0
        %684 = vmatprep.subr.bf16.mxu0 %v231
        %685 = vmatpush1.bf16.msra.mxu0 %v228
        %686 = vmatprep.subr.bf16.mxu0 0
        %687 = vmatpush1.bf16.msra.mxu0 0
        %688 = vmatprep.subr.bf16.mxu0 0
        %689 = vmatpush1.bf16.msra.mxu0 0
        %690 = vmatprep.subr.bf16.mxu0 0
        %691 = vmatpush1.bf16.msra.mxu0 0
        %692 = vmatprep.subr.bf16.mxu0 0
        %693 = vmatpush1.bf16.msra.mxu0 0
        %694 = vmatprep.subr.bf16.mxu0 0
        %695 = vmatpush1.bf16.msra.mxu0 0
        %696 = vmatprep.subr.bf16.mxu0 0
        %697 = vmatpush1.bf16.msra.mxu0 0
        %698 = vmatprep.subr.bf16.mxu0 0
        %699 = vmatpush1.bf16.msra.mxu0 0
        %700 = vmatprep.subr.bf16.mxu0 0
        %701 = vmatpush1.bf16.msra.mxu0 0
        %702 = vmatprep.subr.bf16.mxu0 0
        %703 = vmatpush1.bf16.msra.mxu0 0
        %704 = vmatprep.subr.bf16.mxu0 0
        %705 = vmatpush1.bf16.msra.mxu0 0
        %706 = vmatprep.subr.bf16.mxu0 0
        %707 = vmatpush1.bf16.msra.mxu0 0
        %708 = vmatprep.subr.bf16.mxu0 0
        %709 = vmatpush1.bf16.msra.mxu0 0
        %710 = vmatprep.subr.bf16.mxu0 0
        %711 = vmatpush1.bf16.msra.mxu0 0
        %712 = vmatprep.subr.bf16.mxu0 0
        %713 = vmatpush1.bf16.msra.mxu0 0
        %714 = vmatprep.subr.bf16.mxu0 0
        %715 = vmatpush1.bf16.msra.mxu0 0
        %716 = vmatprep.mubr.bf16.mxu0 0
        %717 = vmatmul.mubr.bf16.gmra.mrb[0].mxu0 %v559
        %v718 = vpop.f32.mrb[0].mxu0
        %v719 = vadd.f32 0.0, %v718
        %v720 = vpop.f32.mrb[0].mxu0
        %v721 = vadd.f32 0.0, %v720
        %v722 = vpop.f32.mrb[0].mxu0
        %v723 = vpop.f32.mrb[0].mxu0
        %724 = vdwg.mxu0
        %v725 = vpack.c.bf16 %v596, %v596
        %v726 = vpack.c.bf16 %v598, %v598
        %v727 = vpack.c.bf16 %v637, %v637
        %v728 = vpack.c.bf16 %v639, %v639
        %v729 = vpack.c.bf16 %v678, %v678
        %v730 = vpack.c.bf16 %v680, %v680
        %v731 = vpack.c.bf16 %v719, %v719
        %v732 = vpack.c.bf16 %v721, %v721
        %v741 = vunpack.c.l.b16 %v725
        %v742 = vunpack.c.l.b16 %v726
        %v743 = vunpack.c.l.b16 %v727
        %v744 = vunpack.c.l.b16 %v728
        %v745 = vunpack.c.l.b16 %v729
        %v746 = vunpack.c.l.b16 %v730
        %v747 = vunpack.c.l.b16 %v731
        %v748 = vunpack.c.l.b16 %v732
        %v749 = vpack.c.b16 %v742, %v741
        %v750 = vpack.c.b16 %v744, %v743
        %v751 = vpack.c.b16 %v746, %v745
        %v752 = vpack.c.b16 %v748, %v747
        %757 = vst [vmem:[%s161 + $0x80] sm:$0x33] %v749
        %758 = vst [vmem:[%s161 + $0x88] sm:$0x33] %v750
        %759 = vst [vmem:[%s161 + $0x90] sm:$0x33] %v751
        %760 = vst [vmem:[%s161 + $0x98] sm:$0x33] %v752
        %p761 = scmp.lt.s32.totalorder %s16, 1
        %s762 = scalar_select %p761, %s16, 1
        %s763 = smul.addr %s762, 40
        %s764 = smul.addr %s763, 4
        %s765 = scalar_lea.vmem %s2, %s764
        // Predicated region
        $region33: #{tpu_custom_call.1} parent=27 // pred_check
          %p766 = pneg %p81
        $region34: #{tpu_custom_call.1} parent=27 // pred_check_branch
          %768 = sbr.rel (%p766) target = $region36
        $region35: #{tpu_custom_call.1} parent=27 // pred_region
          _
        $region36: #{tpu_custom_call.1} parent=27 // pred_fallthru
          _
      $region28: #{tpu_custom_call.1} parent=5 // pred_fallthru
        _
      %p769 = scmp.le.s32.totalorder 2, %s11
      // Predicated region
      $region37: #{tpu_custom_call.1} parent=5 // pred_check
        %p770 = pneg %p769
      $region38: #{tpu_custom_call.1} parent=5 // pred_check_branch
        %772 = sbr.rel (%p770) target = $region40
      $region39: #{tpu_custom_call.1} parent=5 // pred_region
        %s773 = ssub.s32 %s11, 2
        // Predicated region
        $region41: #{tpu_custom_call.1} parent=39 // pred_check
          %p774 = pneg %p87
        $region42: #{tpu_custom_call.1} parent=39 // pred_check_branch
          %776 = sbr.rel (%p774) target = $region44
        $region43: #{tpu_custom_call.1} parent=39 // pred_region
          %p777 = scmp.lt.s32.totalorder %s17, 1
          %s778 = scalar_select %p777, %s17, 1
          %s779 = smul.addr %s778, 40
          %s780 = smul.addr %s779, 4
          %s781 = scalar_lea.vmem %s2, %s780
        $region44: #{tpu_custom_call.1} parent=39 // pred_fallthru
          _
      $region40: #{tpu_custom_call.1} parent=5 // pred_fallthru
        _
    $region6: #{tpu_custom_call.1} parent=1 // loop_footer
      %s15 = sadd.s32 1, %s11
    $region7: #{tpu_custom_call.1} parent=1 // loop_footer_branch
      %10 = sbr.rel target = $region3
    $region8: #{tpu_custom_call.1} parent=1 // loop_exit
      _
    %782 = vsyncpa [#allocation3], 1
    %s783 = scalar_lea.sflag [#allocation3], 1
    %784 = vsyncpa %s783, 1

</llo_original>
